<compile_context>
chip_gen: v5e
topology: v5e:2x2
jax: 0.10.0
libtpu: 0.0.40
codegen_flags: <defaults>
</compile_context>

<pallas_src>
import jax
import jax.numpy as jnp
import numpy as np
from jax.experimental import pallas as pl
from jax.experimental.pallas import tpu as pltpu

_LANE = 128
# Preferred lane-dense widths (multiples of 128); wider first => longer
# contiguous per-row DMAs and fewer grid steps.
_PREFERRED_COLS = (8192, 4096, 2048, 1024, 512, 256, 128)


# ---------------------------------------------------------------------------
# Kernel body: identity copy of one (tile_rows, cols) VMEM block.
# ---------------------------------------------------------------------------
def _copy_kernel(x_ref, o_ref):
    o_ref[...] = x_ref[...]


def _tile_budget():
    """Return (per-buffer tile bytes, vmem_limit_bytes), sized per generation."""
    vmem = 128 * 1024 * 1024
    try:
        info = pltpu.get_tpu_info()
        vmem = int(getattr(info, "vmem_capacity_bytes", vmem))
    except Exception:
        pass
    if vmem >= 100 * 1024 * 1024:
        # v5e / v6e: 128 MiB physical VMEM -> big tiles, raised scoped limit.
        return 8 * 1024 * 1024, 64 * 1024 * 1024
    # v7x: 64 MiB physical (32 MiB scoped default). 2 in + 2 out double
    # buffers at 6 MiB each stay within ~24-32 MiB.
    return 6 * 1024 * 1024, 32 * 1024 * 1024


def _sublane_multiple(dtype) -> int:
    # 8 for 32-bit, 16 for bf16/fp16, 32 for int8/fp8 (sub-32-bit packs sublanes).
    return max(8, 32 // max(1, jnp.dtype(dtype).itemsize))


def _lane_dense_factorization(n):
    """(rows, cols) with rows*cols == n and cols a multiple of 128, or None."""
    for cols in _PREFERRED_COLS:
        if cols <= n and n % cols == 0:
            return n // cols, cols
    return None


def _copy_2d(x2d: jax.Array) -> jax.Array:
    """Row-tiled, lane-dense identity copy of a 2-D array via pallas_call."""
    rows, cols = x2d.shape
    itemsize = jnp.dtype(x2d.dtype).itemsize
    tile_bytes, vmem_limit = _tile_budget()
    sub = _sublane_multiple(x2d.dtype)

    tile_rows = max(sub, tile_bytes // max(1, cols * itemsize))
    tile_rows = (tile_rows // sub) * sub          # dtype-aware sublane multiple
    if tile_rows >= rows:
        tile_rows = rows                          # full-extent block: always legal

    grid = (pl.cdiv(rows, tile_rows),)
    return pl.pallas_call(
        _copy_kernel,
        out_shape=jax.ShapeDtypeStruct((rows, cols), x2d.dtype),
        grid=grid,
        in_specs=[pl.BlockSpec((tile_rows, cols), lambda i: (i, 0))],
        out_specs=pl.BlockSpec((tile_rows, cols), lambda i: (i, 0)),
        compiler_params=pltpu.CompilerParams(
            dimension_semantics=("parallel",),
            vmem_limit_bytes=vmem_limit,
        ),
    )(x2d)


def _pallas_copy_identity(x: jax.Array) -> jax.Array:
    """Materialize x into a fresh buffer via lane-dense Pallas copies."""
    n = x.size
    if n == 0:
        return x  # empty tensor: nothing to copy
    orig_shape = x.shape
    flat = x.reshape(-1)  # contiguous row-major: metadata-only

    if n < _LANE:
        # Tiny input: single full-extent block, one grid step.
        return _copy_2d(flat.reshape(1, n)).reshape(orig_shape)

    fact = _lane_dense_factorization(n)
    if fact is not None:
        rows, cols = fact
        return _copy_2d(flat.reshape(rows, cols)).reshape(orig_shape)

    # Ragged total size (no 128-multiple divisor): copy a lane-dense body at
    # 1024-wide rows (full-lane unmasked stores) and a small (<1024) tail
    # separately.  Also guarantees no single block can exceed the VMEM budget.
    cols = min(1024, (n // _LANE) * _LANE)
    n_body = (n // cols) * cols
    body = _copy_2d(flat[:n_body].reshape(-1, cols)).reshape(-1)
    tail_len = n - n_body
    if tail_len:
        tail = _copy_2d(flat[n_body:].reshape(1, tail_len)).reshape(-1)
        out_flat = jnp.concatenate([body, tail])
    else:
        out_flat = body
    return out_flat.reshape(orig_shape)


# ---------------------------------------------------------------------------
# Module wrapper (mirrors the PyTorch Reshape module).
# ---------------------------------------------------------------------------
class Reshape:
    """JAX/Pallas equivalent of the PyTorch Reshape module: x.reshape(*shape).

    Default path materializes the data through a lane-dense tiled Pallas copy
    kernel, then applies the (metadata-only) reshape.  zero_copy=True skips
    the kernel entirely (pure jnp.reshape) when no kernel boundary is needed.
    """

    def __init__(self, *args: int, zero_copy: bool = False):
        self.shape = tuple(args)
        self.zero_copy = zero_copy

    def __call__(self, x: jax.Array) -> jax.Array:
        if self.zero_copy:
            return jnp.reshape(x, self.shape)
        y = _pallas_copy_identity(x)
        return jnp.reshape(y, self.shape)  # supports -1, like torch.reshape


if __name__ == "__main__":
    k0, k1, k2 = jax.random.split(jax.random.PRNGKey(0), 3)

    # 1) Lane-dense factorized path: 2*4*16*16 = 2048 elements -> (1, 2048).
    x = jax.random.normal(k0, (2, 4, 16, 16), dtype=jnp.float32)
    x_np = np.asarray(x)
    out = jax.block_until_ready(Reshape(2, 4, 256)(x))
    assert out.shape == (2, 4, 256) and out.dtype == x.dtype
    assert np.array_equal(np.asarray(out), x_np.reshape(2, 4, 256))

    # 2) -1 dim inference, like torch.reshape.
    out2 = jax.block_until_ready(Reshape(2, -1)(x))
    assert out2.shape == (2, 1024)
    assert np.array_equal(np.asarray(out2), x_np.reshape(2, 1024))

    # 3) Ragged total size with bf16: 600 elements -> 512-wide body + 88 tail.
    xr = jax.random.normal(k1, (2, 300), dtype=jnp.bfloat16)
    outr = jax.block_until_ready(Reshape(4, 150)(xr))
    assert outr.shape == (4, 150) and outr.dtype == xr.dtype
    assert np.array_equal(np.asarray(outr), np.asarray(jnp.reshape(xr, (4, 150))))

    # 4) Tiny input (< 128 elements): single full-extent block.
    xt = jax.random.normal(k2, (5, 3, 7), dtype=jnp.float32)
    outt = jax.block_until_ready(Reshape(-1)(xt))
    assert outt.shape == (105,)
    assert np.array_equal(np.asarray(outt), np.asarray(xt).reshape(-1))

    # 5) Zero-copy (metadata-only) path.
    outv = jax.block_until_ready(Reshape(4, 512, zero_copy=True)(x))
    assert outv.shape == (4, 512)
    assert np.array_equal(np.asarray(outv), x_np.reshape(4, 512))

    print("KERNEL_OK")
</pallas_src>

<mosaic_0001>
module attributes {stable_mosaic.version = 11 : i64} {
  func.func @_copy_kernel(%arg0: i32, %arg1: memref<1x2048xf32, #tpu.memory_space<vmem>>, %arg2: memref<1x2048xf32, #tpu.memory_space<vmem>>) attributes {dimension_semantics = [#tpu.dimension_semantics<parallel>], iteration_bounds = array<i64: 1>, scalar_prefetch = 0 : i64, scratch_operands = 0 : i64, tpu.core_type = #tpu.core_type<tc>, window_params = [{transform_indices = @transform_0, window_bounds = array<i64: 1, 2048>}, {transform_indices = @transform_1, window_bounds = array<i64: 1, 2048>}]} {
    %c0 = arith.constant 0 : index
    %c0_0 = arith.constant 0 : index
    %0 = vector.load %arg1[%c0, %c0_0] : memref<1x2048xf32, #tpu.memory_space<vmem>>, vector<1x2048xf32>
    %c0_1 = arith.constant 0 : index
    %c0_2 = arith.constant 0 : index
    %1 = vector.load %arg2[%c0_1, %c0_2] : memref<1x2048xf32, #tpu.memory_space<vmem>>, vector<1x2048xf32>
    tpu.vector_store %arg2[%c0_1, %c0_2], %0 {strides = array<i32>} : memref<1x2048xf32, #tpu.memory_space<vmem>>, vector<1x2048xf32>,
    return
  }
  func.func @transform_0(%arg0: i32) -> (i32, i32) {
    %c0_i32 = arith.constant 0 : i32
    %c0_i32_0 = arith.constant 0 : i32
    return %arg0, %c0_i32 : i32, i32
  }
  func.func @transform_1(%arg0: i32) -> (i32, i32) {
    %c0_i32 = arith.constant 0 : i32
    %c0_i32_0 = arith.constant 0 : i32
    return %arg0, %c0_i32 : i32, i32
  }
}

</mosaic_0001>

<llo_original>
// kernel: tpu_custom_call.1
$region0: #{tpu_custom_call.1}
  #allocation0 [shape = 'u32[]', space=smem, size = 0x4, offset = 0x4, fixed_abs, tag = 'smem constant byte address 0x4 - core index']
  #allocation1 [shape = 'u32[72,128]{1,0:T(1,128)}', space=vmem, size = 0x9000, scoped, tag = 'internal scratch']
  %s0 = inlined_call_operand.hbm [shape: f32[1,2048], index: 0, kind: input, shape index: {}]
  %s1 = inlined_call_operand.hbm [shape: f32[1,2048], index: 1, kind: output, shape index: {}]
  %s2 = sld [smem:[#allocation0]]
  $region18: #{tpu_custom_call.1} parent=0
    _
  %s4 = ssub.s32 1, %s2
  %s5 = scalar_select 0, %s4, %s2
  $region1: #{tpu_custom_call.1} parent=0
    #allocation2 [shape = 'u8[8192]{0}', space=vmem, size = 0x2000, scoped, tag = 'input window, operand 0, single buffered']
    #allocation3 [shape = 's32[1]{0}', space=sflag, size = 0x4, scoped, tag = 'scoped memory for tpu_custom_call.1']
    #allocation4 [shape = 's32[1]{0}', space=sflag, size = 0x4, scoped, tag = 'scoped memory for tpu_custom_call.1']
    #allocation5 [shape = 'u8[8192]{0}', space=vmem, size = 0x2000, scoped, tag = 'output window, operand 0, single buffered']
    %6 = vsyncpa [#allocation3], 0
    %7 = vsyncpa [#allocation4], 0
    // Predicated region
    $region2: #{tpu_custom_call.1} parent=1 // pred_check
      _
    $region3: #{tpu_custom_call.1} parent=1 // pred_check_branch
      %9 = sbr.rel (0) target = $region5
    $region4: #{tpu_custom_call.1} parent=1 // pred_region
      %11 = vsyncadd [#allocation3], 0
      %s13 = sshll.u32 %s0, 4
      %s14 = int_to_ptr.hbm [resolvable:$true] %s13
      %s15 = sshll.u32 [#allocation2], 4
      %s16 = int_to_ptr.vmem [resolvable:$true] %s15
      %18 = dma.hbm_to_vmem [thread:$0]  %s14, 256, %s16, [#allocation3]
    $region5: #{tpu_custom_call.1} parent=1 // pred_fallthru
      _
    // Predicated region
    $region6: #{tpu_custom_call.1} parent=1 // pred_check
      _
    $region7: #{tpu_custom_call.1} parent=1 // pred_check_branch
      %20 = sbr.rel (0) target = $region9
    $region8: #{tpu_custom_call.1} parent=1 // pred_region
      %22 = dma.done [#allocation3], 256
    $region9: #{tpu_custom_call.1} parent=1 // pred_fallthru
      _
    %v23 = vld [vmem:[#allocation2] sm:$0xff]
    %v24 = vld [vmem:[#allocation2 + $0x8] sm:$0xff]
    %25 = vst [vmem:[#allocation5] sm:$0xff] %v23
    %26 = vst [vmem:[#allocation5 + $0x8] sm:$0xff] %v24
    // Predicated region
    $region10: #{tpu_custom_call.1} parent=1 // pred_check
      _
    $region11: #{tpu_custom_call.1} parent=1 // pred_check_branch
      %28 = sbr.rel (0) target = $region13
    $region12: #{tpu_custom_call.1} parent=1 // pred_region
      %30 = vsyncadd [#allocation4], 0
      %s32 = sshll.u32 [#allocation5], 4
      %s33 = int_to_ptr.vmem [resolvable:$true] %s32
      %s34 = sshll.u32 %s1, 4
      %s35 = int_to_ptr.hbm [resolvable:$true] %s34
      %37 = dma.vmem_to_hbm [thread:$0]  %s33, 256, %s35, [#allocation4]
    $region13: #{tpu_custom_call.1} parent=1 // pred_fallthru
      _
    // Predicated region
    $region14: #{tpu_custom_call.1} parent=1 // pred_check
      _
    $region15: #{tpu_custom_call.1} parent=1 // pred_check_branch
      %39 = sbr.rel (0) target = $region17
    $region16: #{tpu_custom_call.1} parent=1 // pred_region
      %41 = dma.done [#allocation4], 256
    $region17: #{tpu_custom_call.1} parent=1 // pred_fallthru
      _
    %42 = vsyncpa [#allocation3], 1
    %43 = vsyncpa [#allocation4], 1

</llo_original>
